<compile_context>
chip_gen: v5e
topology: v5e:2x2
jax: 0.10.0
libtpu: 0.0.40
codegen_flags: <defaults>
</compile_context>

<pallas_src>
import jax
import jax.numpy as jnp
from jax.experimental import pallas as pl
from jax.experimental.pallas import tpu as pltpu

_LANE = 128


def _round_up(n, m):
    return ((n + m - 1) // m) * m


def _pad2(a, rows, cols):
    r, c = a.shape
    if r == rows and c == cols:
        return a
    return jnp.pad(a, ((0, rows - r), (0, cols - c)))


def _autoencoder_kernel(
    x_ref,
    w1_ref, b1_ref, w2_ref, b2_ref, w3_ref, b3_ref,   # encoder
    w4_ref, b4_ref, w5_ref, b5_ref, w6_ref, b6_ref,   # decoder
    enc_ref, dec_ref,
):
    cd = jnp.bfloat16  # MXU operand dtype

    def linear(h_bf16, w_ref, b_ref):
        # bf16 x bf16 -> f32 accumulation on the MXU, f32 bias add on the VPU.
        return (
            jnp.dot(h_bf16, w_ref[...], preferred_element_type=jnp.float32)
            + b_ref[...]
        )

    # Native-width f32 input tile; cast to bf16 in VMEM (no wrapper pad pass).
    x = x_ref[...].astype(cd)

    # ---- encoder: Linear -> ReLU -> Linear -> ReLU -> Linear ----
    h = jnp.maximum(linear(x, w1_ref, b1_ref), 0.0).astype(cd)
    h = jnp.maximum(linear(h, w2_ref, b2_ref), 0.0).astype(cd)
    z = linear(h, w3_ref, b3_ref)                      # (tb, dlp) f32, zero-padded cols

    latent_dim = enc_ref.shape[1]
    enc_ref[...] = z[:, :latent_dim].astype(enc_ref.dtype)   # native-width store

    # ---- decoder: Linear -> ReLU -> Linear -> ReLU -> Linear -> Sigmoid ----
    h = jnp.maximum(linear(z.astype(cd), w4_ref, b4_ref), 0.0).astype(cd)
    h = jnp.maximum(linear(h, w5_ref, b5_ref), 0.0).astype(cd)
    d = linear(h, w6_ref, b6_ref)                      # (tb, dip) f32 logits

    input_dim = dec_ref.shape[1]
    d = d[:, :input_dim]
    # sigmoid(d) = 0.5 * (tanh(d/2) + 1): EUP tanh, saturates cleanly (no exp overflow).
    dec_ref[...] = (0.5 * jnp.tanh(0.5 * d) + 0.5).astype(dec_ref.dtype)


def autoencoder_forward(x, params, *, batch_tile=2048):
    """x: (B, input_dim) f32.  params: dict of (in,out) weights and (1,out) biases.

    Returns (encoded (B, latent_dim), decoded (B, input_dim)) in f32.
    batch_tile: 2048 default; up to 4096 is fine on v6e/v7x (vmem_limit_bytes is
    set to 32 MiB so v5e's 16 MiB default scoped VMEM is not the ceiling).
    """
    B, input_dim = x.shape
    hidden_dim = params["w1"].shape[1]
    latent_dim = params["w3"].shape[1]

    # Lane-dense padded feature dims for the MXU-facing weights (exact: zero pad).
    dip = _round_up(input_dim, _LANE)
    dhp = _round_up(hidden_dim, _LANE)
    dlp = _round_up(latent_dim, _LANE)

    # Batch tiling: pipeline over batch, weights stay VMEM-resident.
    # Tile is a multiple of 16 (bf16 sublane tile) per review.
    batch_tile = max(16, _round_up(batch_tile, 16))
    tb = min(batch_tile, _round_up(B, 16))
    b_pad = _round_up(B, tb)
    grid = (b_pad // tb,)

    cd = jnp.bfloat16
    # Only pad rows (and only when needed); features stay at native width.
    x_p = x if b_pad == B else jnp.pad(x, ((0, b_pad - B), (0, 0)))

    layer_dims = [
        (input_dim, dhp), (dhp, dhp), (dhp, dlp),   # encoder (layer-1 K is native)
        (dlp, dhp), (dhp, dhp), (dhp, dip),         # decoder
    ]
    operands = [x_p]
    in_specs = [pl.BlockSpec((tb, input_dim), lambda i: (i, 0))]
    for idx, (din, dout) in enumerate(layer_dims, start=1):
        w = _pad2(params[f"w{idx}"], din, dout).astype(cd)
        b = _pad2(params[f"b{idx}"], 1, dout).astype(jnp.float32)
        operands += [w, b]
        # Constant index_map -> block stays resident in VMEM across grid steps.
        in_specs += [
            pl.BlockSpec((din, dout), lambda i: (0, 0)),
            pl.BlockSpec((1, dout), lambda i: (0, 0)),
        ]

    # Native-width outputs: (b_pad, latent_dim) and (b_pad, input_dim) f32.
    out_shape = (
        jax.ShapeDtypeStruct((b_pad, latent_dim), jnp.float32),
        jax.ShapeDtypeStruct((b_pad, input_dim), jnp.float32),
    )
    out_specs = (
        pl.BlockSpec((tb, latent_dim), lambda i: (i, 0)),
        pl.BlockSpec((tb, input_dim), lambda i: (i, 0)),
    )

    flops = 2 * b_pad * sum(d_in * d_out for d_in, d_out in layer_dims)
    bytes_accessed = int(
        x_p.size * x_p.dtype.itemsize
        + sum(int(o.size) * o.dtype.itemsize for o in operands[1:])
        + b_pad * (latent_dim + input_dim) * 4
    )
    cost = pl.CostEstimate(
        flops=int(flops),
        transcendentals=int(b_pad * input_dim),
        bytes_accessed=bytes_accessed,
    )

    enc, dec = pl.pallas_call(
        _autoencoder_kernel,
        out_shape=out_shape,
        grid=grid,
        in_specs=in_specs,
        out_specs=out_specs,
        compiler_params=pltpu.CompilerParams(
            dimension_semantics=("parallel",),      # megacore sharding on v7x
            vmem_limit_bytes=32 * 1024 * 1024,      # room for tb=2048..4096 on v5e too
        ),
        cost_estimate=cost,
    )(*operands)

    if b_pad == B:
        return enc, dec
    return enc[:B], dec[:B]


def init_params(key, input_dim, hidden_dim, latent_dim):
    """Deterministic init mimicking PyTorch nn.Linear (uniform +/- 1/sqrt(fan_in))."""
    dims = [
        (input_dim, hidden_dim),   # enc L1
        (hidden_dim, hidden_dim),  # enc L2
        (hidden_dim, latent_dim),  # enc L3
        (latent_dim, hidden_dim),  # dec L1
        (hidden_dim, hidden_dim),  # dec L2
        (hidden_dim, input_dim),   # dec L3
    ]
    params = {}
    for i, (din, dout) in enumerate(dims, start=1):
        key, kw, kb = jax.random.split(key, 3)
        bound = 1.0 / jnp.sqrt(jnp.float32(din))
        params[f"w{i}"] = jax.random.uniform(
            kw, (din, dout), jnp.float32, minval=-bound, maxval=bound
        )
        params[f"b{i}"] = jax.random.uniform(
            kb, (1, dout), jnp.float32, minval=-bound, maxval=bound
        )
    return params


def reference_forward(x, p):
    """Pure-JAX f32 reference for correctness check."""
    h = jax.nn.relu(x @ p["w1"] + p["b1"])
    h = jax.nn.relu(h @ p["w2"] + p["b2"])
    z = h @ p["w3"] + p["b3"]
    h = jax.nn.relu(z @ p["w4"] + p["b4"])
    h = jax.nn.relu(h @ p["w5"] + p["b5"])
    d = jax.nn.sigmoid(h @ p["w6"] + p["b6"])
    return z, d


if __name__ == "__main__":
    input_dim, hidden_dim, latent_dim = 16, 32, 8

    key = jax.random.PRNGKey(0)
    key, kx1, kx2, kx3 = jax.random.split(key, 4)
    params = init_params(key, input_dim, hidden_dim, latent_dim)

    # bf16 MXU operands => compare against the f32 reference with loose tolerance.
    TOL = dict(atol=2e-2, rtol=2e-2)

    def check(xb, enc, dec):
        enc_r, dec_r = reference_forward(xb, params)
        assert enc.shape == (xb.shape[0], latent_dim)
        assert dec.shape == (xb.shape[0], input_dim)
        assert jnp.allclose(enc, enc_r, **TOL)
        assert jnp.allclose(dec, dec_r, **TOL)

    # 1) Small single-tile case (grid=(1,), row padding to the 16-sublane tile).
    x1 = jax.random.normal(kx1, (8, input_dim), jnp.float32)
    e1, d1 = autoencoder_forward(x1, params)
    jax.block_until_ready((e1, d1))
    check(x1, e1, d1)

    # 2) Multi-step grid with a ragged batch (grid=(3,), batch padded 300 -> 384).
    x2 = jax.random.normal(kx2, (300, input_dim), jnp.float32)
    e2, d2 = autoencoder_forward(x2, params, batch_tile=128)
    jax.block_until_ready((e2, d2))
    check(x2, e2, d2)

    # 3) Default large tile (tb=2048, grid=(2,)) exercising the production path.
    x3 = jax.random.normal(kx3, (2500, input_dim), jnp.float32)
    e3, d3 = autoencoder_forward(x3, params)
    jax.block_until_ready((e3, d3))
    check(x3, e3, d3)

    print("KERNEL_OK")
</pallas_src>

<mosaic_0001>
module attributes {stable_mosaic.version = 11 : i64} {
  func.func @_autoencoder_kernel(%arg0: i32, %arg1: memref<16x16xf32, #tpu.memory_space<vmem>>, %arg2: memref<16x128xbf16, #tpu.memory_space<vmem>>, %arg3: memref<1x128xf32, #tpu.memory_space<vmem>>, %arg4: memref<128x128xbf16, #tpu.memory_space<vmem>>, %arg5: memref<1x128xf32, #tpu.memory_space<vmem>>, %arg6: memref<128x128xbf16, #tpu.memory_space<vmem>>, %arg7: memref<1x128xf32, #tpu.memory_space<vmem>>, %arg8: memref<128x128xbf16, #tpu.memory_space<vmem>>, %arg9: memref<1x128xf32, #tpu.memory_space<vmem>>, %arg10: memref<128x128xbf16, #tpu.memory_space<vmem>>, %arg11: memref<1x128xf32, #tpu.memory_space<vmem>>, %arg12: memref<128x128xbf16, #tpu.memory_space<vmem>>, %arg13: memref<1x128xf32, #tpu.memory_space<vmem>>, %arg14: memref<16x8xf32, #tpu.memory_space<vmem>>, %arg15: memref<16x16xf32, #tpu.memory_space<vmem>>) attributes {dimension_semantics = [#tpu.dimension_semantics<parallel>], iteration_bounds = array<i64: 1>, scalar_prefetch = 0 : i64, scratch_operands = 0 : i64, tpu.core_type = #tpu.core_type<tc>, window_params = [{transform_indices = @transform_0, window_bounds = array<i64: 16, 16>}, {pipeline_mode = #tpu.pipeline_mode<synchronous>, transform_indices = @transform_1, window_bounds = array<i64: 16, 128>}, {pipeline_mode = #tpu.pipeline_mode<synchronous>, transform_indices = @transform_2, window_bounds = array<i64: 1, 128>}, {pipeline_mode = #tpu.pipeline_mode<synchronous>, transform_indices = @transform_3, window_bounds = array<i64: 128, 128>}, {pipeline_mode = #tpu.pipeline_mode<synchronous>, transform_indices = @transform_4, window_bounds = array<i64: 1, 128>}, {pipeline_mode = #tpu.pipeline_mode<synchronous>, transform_indices = @transform_5, window_bounds = array<i64: 128, 128>}, {pipeline_mode = #tpu.pipeline_mode<synchronous>, transform_indices = @transform_6, window_bounds = array<i64: 1, 128>}, {pipeline_mode = #tpu.pipeline_mode<synchronous>, transform_indices = @transform_7, window_bounds = array<i64: 128, 128>}, {pipeline_mode = #tpu.pipeline_mode<synchronous>, transform_indices = @transform_8, window_bounds = array<i64: 1, 128>}, {pipeline_mode = #tpu.pipeline_mode<synchronous>, transform_indices = @transform_9, window_bounds = array<i64: 128, 128>}, {pipeline_mode = #tpu.pipeline_mode<synchronous>, transform_indices = @transform_10, window_bounds = array<i64: 1, 128>}, {pipeline_mode = #tpu.pipeline_mode<synchronous>, transform_indices = @transform_11, window_bounds = array<i64: 128, 128>}, {pipeline_mode = #tpu.pipeline_mode<synchronous>, transform_indices = @transform_12, window_bounds = array<i64: 1, 128>}, {transform_indices = @transform_13, window_bounds = array<i64: 16, 8>}, {transform_indices = @transform_14, window_bounds = array<i64: 16, 16>}]} {
    %c0 = arith.constant 0 : index
    %c0_0 = arith.constant 0 : index
    %0 = vector.load %arg1[%c0, %c0_0] : memref<16x16xf32, #tpu.memory_space<vmem>>, vector<16x16xf32>
    %1 = arith.truncf %0 : vector<16x16xf32> to vector<16x16xbf16>
    %c0_1 = arith.constant 0 : index
    %c0_2 = arith.constant 0 : index
    %2 = vector.load %arg2[%c0_1, %c0_2] : memref<16x128xbf16, #tpu.memory_space<vmem>>, vector<16x128xbf16>
    %cst = arith.constant dense<0.000000e+00> : vector<16x128xf32>
    %3 = tpu.matmul %1, %2, %cst {dimension_numbers = #tpu.dot_dimension_numbers<[1], [0], [0], [1], [0, 0, 1, 1], [], []>} : vector<16x16xbf16>, vector<16x128xbf16>, vector<16x128xf32> -> vector<16x128xf32>
    %c0_3 = arith.constant 0 : index
    %c0_4 = arith.constant 0 : index
    %4 = vector.load %arg3[%c0_3, %c0_4] : memref<1x128xf32, #tpu.memory_space<vmem>>, vector<1x128xf32>
    %5 = vector.broadcast %4 : vector<1x128xf32> to vector<16x128xf32>
    %6 = arith.addf %3, %5 : vector<16x128xf32>
    %cst_5 = arith.constant 0.000000e+00 : f32
    %7 = vector.broadcast %cst_5 : f32 to vector<16x128xf32>
    %8 = arith.maximumf %6, %7 : vector<16x128xf32>
    %9 = arith.truncf %8 : vector<16x128xf32> to vector<16x128xbf16>
    %c0_6 = arith.constant 0 : index
    %c0_7 = arith.constant 0 : index
    %10 = vector.load %arg4[%c0_6, %c0_7] : memref<128x128xbf16, #tpu.memory_space<vmem>>, vector<128x128xbf16>
    %cst_8 = arith.constant dense<0.000000e+00> : vector<16x128xf32>
    %11 = tpu.matmul %9, %10, %cst_8 {dimension_numbers = #tpu.dot_dimension_numbers<[1], [0], [0], [1], [0, 0, 1, 1], [], []>} : vector<16x128xbf16>, vector<128x128xbf16>, vector<16x128xf32> -> vector<16x128xf32>
    %c0_9 = arith.constant 0 : index
    %c0_10 = arith.constant 0 : index
    %12 = vector.load %arg5[%c0_9, %c0_10] : memref<1x128xf32, #tpu.memory_space<vmem>>, vector<1x128xf32>
    %13 = vector.broadcast %12 : vector<1x128xf32> to vector<16x128xf32>
    %14 = arith.addf %11, %13 : vector<16x128xf32>
    %cst_11 = arith.constant 0.000000e+00 : f32
    %15 = vector.broadcast %cst_11 : f32 to vector<16x128xf32>
    %16 = arith.maximumf %14, %15 : vector<16x128xf32>
    %17 = arith.truncf %16 : vector<16x128xf32> to vector<16x128xbf16>
    %c0_12 = arith.constant 0 : index
    %c0_13 = arith.constant 0 : index
    %18 = vector.load %arg6[%c0_12, %c0_13] : memref<128x128xbf16, #tpu.memory_space<vmem>>, vector<128x128xbf16>
    %cst_14 = arith.constant dense<0.000000e+00> : vector<16x128xf32>
    %19 = tpu.matmul %17, %18, %cst_14 {dimension_numbers = #tpu.dot_dimension_numbers<[1], [0], [0], [1], [0, 0, 1, 1], [], []>} : vector<16x128xbf16>, vector<128x128xbf16>, vector<16x128xf32> -> vector<16x128xf32>
    %c0_15 = arith.constant 0 : index
    %c0_16 = arith.constant 0 : index
    %20 = vector.load %arg7[%c0_15, %c0_16] : memref<1x128xf32, #tpu.memory_space<vmem>>, vector<1x128xf32>
    %21 = vector.broadcast %20 : vector<1x128xf32> to vector<16x128xf32>
    %22 = arith.addf %19, %21 : vector<16x128xf32>
    %23 = vector.extract_strided_slice %22 {offsets = [0, 0], sizes = [16, 8], strides = [1, 1]} : vector<16x128xf32> to vector<16x8xf32>
    %c0_17 = arith.constant 0 : index
    %c0_18 = arith.constant 0 : index
    %24 = vector.load %arg14[%c0_17, %c0_18] : memref<16x8xf32, #tpu.memory_space<vmem>>, vector<16x8xf32>
    tpu.vector_store %arg14[%c0_17, %c0_18], %23 {strides = array<i32>} : memref<16x8xf32, #tpu.memory_space<vmem>>, vector<16x8xf32>,
    %25 = arith.truncf %22 : vector<16x128xf32> to vector<16x128xbf16>
    %c0_19 = arith.constant 0 : index
    %c0_20 = arith.constant 0 : index
    %26 = vector.load %arg8[%c0_19, %c0_20] : memref<128x128xbf16, #tpu.memory_space<vmem>>, vector<128x128xbf16>
    %cst_21 = arith.constant dense<0.000000e+00> : vector<16x128xf32>
    %27 = tpu.matmul %25, %26, %cst_21 {dimension_numbers = #tpu.dot_dimension_numbers<[1], [0], [0], [1], [0, 0, 1, 1], [], []>} : vector<16x128xbf16>, vector<128x128xbf16>, vector<16x128xf32> -> vector<16x128xf32>
    %c0_22 = arith.constant 0 : index
    %c0_23 = arith.constant 0 : index
    %28 = vector.load %arg9[%c0_22, %c0_23] : memref<1x128xf32, #tpu.memory_space<vmem>>, vector<1x128xf32>
    %29 = vector.broadcast %28 : vector<1x128xf32> to vector<16x128xf32>
    %30 = arith.addf %27, %29 : vector<16x128xf32>
    %cst_24 = arith.constant 0.000000e+00 : f32
    %31 = vector.broadcast %cst_24 : f32 to vector<16x128xf32>
    %32 = arith.maximumf %30, %31 : vector<16x128xf32>
    %33 = arith.truncf %32 : vector<16x128xf32> to vector<16x128xbf16>
    %c0_25 = arith.constant 0 : index
    %c0_26 = arith.constant 0 : index
    %34 = vector.load %arg10[%c0_25, %c0_26] : memref<128x128xbf16, #tpu.memory_space<vmem>>, vector<128x128xbf16>
    %cst_27 = arith.constant dense<0.000000e+00> : vector<16x128xf32>
    %35 = tpu.matmul %33, %34, %cst_27 {dimension_numbers = #tpu.dot_dimension_numbers<[1], [0], [0], [1], [0, 0, 1, 1], [], []>} : vector<16x128xbf16>, vector<128x128xbf16>, vector<16x128xf32> -> vector<16x128xf32>
    %c0_28 = arith.constant 0 : index
    %c0_29 = arith.constant 0 : index
    %36 = vector.load %arg11[%c0_28, %c0_29] : memref<1x128xf32, #tpu.memory_space<vmem>>, vector<1x128xf32>
    %37 = vector.broadcast %36 : vector<1x128xf32> to vector<16x128xf32>
    %38 = arith.addf %35, %37 : vector<16x128xf32>
    %cst_30 = arith.constant 0.000000e+00 : f32
    %39 = vector.broadcast %cst_30 : f32 to vector<16x128xf32>
    %40 = arith.maximumf %38, %39 : vector<16x128xf32>
    %41 = arith.truncf %40 : vector<16x128xf32> to vector<16x128xbf16>
    %c0_31 = arith.constant 0 : index
    %c0_32 = arith.constant 0 : index
    %42 = vector.load %arg12[%c0_31, %c0_32] : memref<128x128xbf16, #tpu.memory_space<vmem>>, vector<128x128xbf16>
    %cst_33 = arith.constant dense<0.000000e+00> : vector<16x128xf32>
    %43 = tpu.matmul %41, %42, %cst_33 {dimension_numbers = #tpu.dot_dimension_numbers<[1], [0], [0], [1], [0, 0, 1, 1], [], []>} : vector<16x128xbf16>, vector<128x128xbf16>, vector<16x128xf32> -> vector<16x128xf32>
    %c0_34 = arith.constant 0 : index
    %c0_35 = arith.constant 0 : index
    %44 = vector.load %arg13[%c0_34, %c0_35] : memref<1x128xf32, #tpu.memory_space<vmem>>, vector<1x128xf32>
    %45 = vector.broadcast %44 : vector<1x128xf32> to vector<16x128xf32>
    %46 = arith.addf %43, %45 : vector<16x128xf32>
    %47 = vector.extract_strided_slice %46 {offsets = [0, 0], sizes = [16, 16], strides = [1, 1]} : vector<16x128xf32> to vector<16x16xf32>
    %cst_36 = arith.constant 5.000000e-01 : f32
    %48 = vector.broadcast %cst_36 : f32 to vector<16x16xf32>
    %49 = arith.mulf %48, %47 : vector<16x16xf32>
    %50 = math.tanh %49 : vector<16x16xf32>
    %cst_37 = arith.constant 5.000000e-01 : f32
    %51 = vector.broadcast %cst_37 : f32 to vector<16x16xf32>
    %52 = arith.mulf %51, %50 : vector<16x16xf32>
    %cst_38 = arith.constant 5.000000e-01 : f32
    %53 = vector.broadcast %cst_38 : f32 to vector<16x16xf32>
    %54 = arith.addf %52, %53 : vector<16x16xf32>
    %c0_39 = arith.constant 0 : index
    %c0_40 = arith.constant 0 : index
    %55 = vector.load %arg15[%c0_39, %c0_40] : memref<16x16xf32, #tpu.memory_space<vmem>>, vector<16x16xf32>
    tpu.vector_store %arg15[%c0_39, %c0_40], %54 {strides = array<i32>} : memref<16x16xf32, #tpu.memory_space<vmem>>, vector<16x16xf32>,
    return
  }
  func.func @transform_0(%arg0: i32) -> (i32, i32) {
    %c0_i32 = arith.constant 0 : i32
    %c0_i32_0 = arith.constant 0 : i32
    return %arg0, %c0_i32 : i32, i32
  }
  func.func @transform_1(%arg0: i32) -> (i32, i32) {
    %c0_i32 = arith.constant 0 : i32
    %c0_i32_0 = arith.constant 0 : i32
    %c0_i32_1 = arith.constant 0 : i32
    return %c0_i32, %c0_i32_0 : i32, i32
  }
  func.func @transform_2(%arg0: i32) -> (i32, i32) {
    %c0_i32 = arith.constant 0 : i32
    %c0_i32_0 = arith.constant 0 : i32
    %c0_i32_1 = arith.constant 0 : i32
    return %c0_i32, %c0_i32_0 : i32, i32
  }
  func.func @transform_3(%arg0: i32) -> (i32, i32) {
    %c0_i32 = arith.constant 0 : i32
    %c0_i32_0 = arith.constant 0 : i32
    %c0_i32_1 = arith.constant 0 : i32
    return %c0_i32, %c0_i32_0 : i32, i32
  }
  func.func @transform_4(%arg0: i32) -> (i32, i32) {
    %c0_i32 = arith.constant 0 : i32
    %c0_i32_0 = arith.constant 0 : i32
    %c0_i32_1 = arith.constant 0 : i32
    return %c0_i32, %c0_i32_0 : i32, i32
  }
  func.func @transform_5(%arg0: i32) -> (i32, i32) {
    %c0_i32 = arith.constant 0 : i32
    %c0_i32_0 = arith.constant 0 : i32
    %c0_i32_1 = arith.constant 0 : i32
    return %c0_i32, %c0_i32_0 : i32, i32
  }
  func.func @transform_6(%arg0: i32) -> (i32, i32) {
    %c0_i32 = arith.constant 0 : i32
    %c0_i32_0 = arith.constant 0 : i32
    %c0_i32_1 = arith.constant 0 : i32
    return %c0_i32, %c0_i32_0 : i32, i32
  }
  func.func @transform_7(%arg0: i32) -> (i32, i32) {
    %c0_i32 = arith.constant 0 : i32
    %c0_i32_0 = arith.constant 0 : i32
    %c0_i32_1 = arith.constant 0 : i32
    return %c0_i32, %c0_i32_0 : i32, i32
  }
  func.func @transform_8(%arg0: i32) -> (i32, i32) {
    %c0_i32 = arith.constant 0 : i32
    %c0_i32_0 = arith.constant 0 : i32
    %c0_i32_1 = arith.constant 0 : i32
    return %c0_i32, %c0_i32_0 : i32, i32
  }
  func.func @transform_9(%arg0: i32) -> (i32, i32) {
    %c0_i32 = arith.constant 0 : i32
    %c0_i32_0 = arith.constant 0 : i32
    %c0_i32_1 = arith.constant 0 : i32
    return %c0_i32, %c0_i32_0 : i32, i32
  }
  func.func @transform_10(%arg0: i32) -> (i32, i32) {
    %c0_i32 = arith.constant 0 : i32
    %c0_i32_0 = arith.constant 0 : i32
    %c0_i32_1 = arith.constant 0 : i32
    return %c0_i32, %c0_i32_0 : i32, i32
  }
  func.func @transform_11(%arg0: i32) -> (i32, i32) {
    %c0_i32 = arith.constant 0 : i32
    %c0_i32_0 = arith.constant 0 : i32
    %c0_i32_1 = arith.constant 0 : i32
    return %c0_i32, %c0_i32_0 : i32, i32
  }
  func.func @transform_12(%arg0: i32) -> (i32, i32) {
    %c0_i32 = arith.constant 0 : i32
    %c0_i32_0 = arith.constant 0 : i32
    %c0_i32_1 = arith.constant 0 : i32
    return %c0_i32, %c0_i32_0 : i32, i32
  }
  func.func @transform_13(%arg0: i32) -> (i32, i32) {
    %c0_i32 = arith.constant 0 : i32
    %c0_i32_0 = arith.constant 0 : i32
    return %arg0, %c0_i32 : i32, i32
  }
  func.func @transform_14(%arg0: i32) -> (i32, i32) {
    %c0_i32 = arith.constant 0 : i32
    %c0_i32_0 = arith.constant 0 : i32
    return %arg0, %c0_i32 : i32, i32
  }
}

</mosaic_0001>

<llo_original>
// kernel: tpu_custom_call.1
$region0: #{tpu_custom_call.1}
  #allocation0 [shape = 'u32[]', space=smem, size = 0x4, offset = 0x4, fixed_abs, tag = 'smem constant byte address 0x4 - core index']
  #allocation1 [shape = 'u32[72,128]{1,0:T(1,128)}', space=vmem, size = 0x9000, scoped, tag = 'internal scratch']
  %s0 = inlined_call_operand.hbm [shape: f32[16,16], index: 0, kind: input, shape index: {}]
  %s1 = inlined_call_operand.hbm [shape: bf16[16,128], index: 1, kind: input, shape index: {}]
  %s2 = inlined_call_operand.vmem [shape: f32[1,128], index: 2, kind: input, shape index: {}]
  %s3 = inlined_call_operand.hbm [shape: bf16[128,128], index: 3, kind: input, shape index: {}]
  %s4 = inlined_call_operand.vmem [shape: f32[1,128], index: 4, kind: input, shape index: {}]
  %s5 = inlined_call_operand.hbm [shape: bf16[128,128], index: 5, kind: input, shape index: {}]
  %s6 = inlined_call_operand.vmem [shape: f32[1,128], index: 6, kind: input, shape index: {}]
  %s7 = inlined_call_operand.hbm [shape: bf16[128,128], index: 7, kind: input, shape index: {}]
  %s8 = inlined_call_operand.vmem [shape: f32[1,128], index: 8, kind: input, shape index: {}]
  %s9 = inlined_call_operand.hbm [shape: bf16[128,128], index: 9, kind: input, shape index: {}]
  %s10 = inlined_call_operand.vmem [shape: f32[1,128], index: 10, kind: input, shape index: {}]
  %s11 = inlined_call_operand.hbm [shape: bf16[128,128], index: 11, kind: input, shape index: {}]
  %s12 = inlined_call_operand.vmem [shape: f32[1,128], index: 12, kind: input, shape index: {}]
  %s13 = inlined_call_operand.vmem [shape: f32[16,8], index: 13, kind: output, shape index: {0}]
  %s14 = inlined_call_operand.hbm [shape: f32[16,16], index: 14, kind: output, shape index: {1}]
  %15 = xla_tuple %s13, %s14
  %s16 = sld [smem:[#allocation0]]
  $region98: #{tpu_custom_call.1} parent=0
    _
  %s18 = ssub.s32 1, %s16
  %s19 = scalar_select 0, %s18, %s16
  $region1: #{tpu_custom_call.1} parent=0
    #allocation2 [shape = 'u8[8192]{0}', space=vmem, size = 0x2000, scoped, tag = 'input window, operand 0, single buffered']
    #allocation3 [shape = 's32[1]{0}', space=sflag, size = 0x4, scoped, tag = 'scoped memory for tpu_custom_call.1']
    #allocation4 [shape = 's32[1]{0}', space=sflag, size = 0x4, scoped, tag = 'scoped memory for tpu_custom_call.1']
    #allocation5 [shape = 'u8[4096]{0}', space=vmem, size = 0x1000, scoped, tag = 'input window, operand 1, single buffered']
    #allocation6 [shape = 's32[1]{0}', space=sflag, size = 0x4, scoped, tag = 'scoped memory for tpu_custom_call.1']
    #allocation7 [shape = 'u8[32768]{0}', space=vmem, size = 0x8000, scoped, tag = 'input window, operand 3, single buffered']
    #allocation8 [shape = 'u8[32768]{0}', space=vmem, size = 0x8000, scoped, tag = 'input window, operand 5, single buffered']
    #allocation9 [shape = 's32[1]{0}', space=sflag, size = 0x4, scoped, tag = 'scoped memory for tpu_custom_call.1']
    #allocation10 [shape = 'u8[32768]{0}', space=vmem, size = 0x8000, scoped, tag = 'input window, operand 7, single buffered']
    #allocation11 [shape = 'u8[32768]{0}', space=vmem, size = 0x8000, scoped, tag = 'input window, operand 9, single buffered']
    #allocation12 [shape = 's32[1]{0}', space=sflag, size = 0x4, scoped, tag = 'scoped memory for tpu_custom_call.1']
    #allocation13 [shape = 'u8[32768]{0}', space=vmem, size = 0x8000, scoped, tag = 'input window, operand 11, single buffered']
    #allocation14 [shape = 'u8[8192]{0}', space=vmem, size = 0x2000, scoped, tag = 'output window, operand 1, single buffered']
    %20 = vsyncpa [#allocation3], 0
    %21 = vsyncpa [#allocation6], 0
    %22 = vsyncpa [#allocation9], 0
    %23 = vsyncpa [#allocation12], 0
    %24 = vsyncpa [#allocation4], 0
    // Predicated region
    $region2: #{tpu_custom_call.1} parent=1 // pred_check
      _
    $region3: #{tpu_custom_call.1} parent=1 // pred_check_branch
      %26 = sbr.rel (0) target = $region5
    $region4: #{tpu_custom_call.1} parent=1 // pred_region
      %28 = vsyncadd [#allocation3], 0
      %s29 = sshll.u32 %s0, 4
      %s30 = int_to_ptr.hbm [resolvable:$true] %s29
      %s31 = sshll.u32 [#allocation2], 4
      %s32 = int_to_ptr.vmem [resolvable:$true] %s31
      %37 = dma.hbm_to_vmem [thread:$0]  %s30, 256, %s32, [#allocation3], 128, 128, 8
    $region5: #{tpu_custom_call.1} parent=1 // pred_fallthru
      _
    // Predicated region
    $region6: #{tpu_custom_call.1} parent=1 // pred_check
      _
    $region7: #{tpu_custom_call.1} parent=1 // pred_check_branch
      %39 = sbr.rel (0) target = $region9
    $region8: #{tpu_custom_call.1} parent=1 // pred_region
      %41 = vsyncadd [#allocation6], 0
      %s42 = sshll.u32 %s1, 4
      %s43 = int_to_ptr.hbm [resolvable:$true] %s42
      %s44 = sshll.u32 [#allocation5], 4
      %s45 = int_to_ptr.vmem [resolvable:$true] %s44
      %50 = dma.hbm_to_vmem [thread:$0]  %s43, 128, %s45, [#allocation6], 64, 64, 4
    $region9: #{tpu_custom_call.1} parent=1 // pred_fallthru
      _
    // Predicated region
    $region10: #{tpu_custom_call.1} parent=1 // pred_check
      _
    $region11: #{tpu_custom_call.1} parent=1 // pred_check_branch
      %52 = sbr.rel (0) target = $region13
    $region12: #{tpu_custom_call.1} parent=1 // pred_region
      _
    $region13: #{tpu_custom_call.1} parent=1 // pred_fallthru
      _
    // Predicated region
    $region14: #{tpu_custom_call.1} parent=1 // pred_check
      _
    $region15: #{tpu_custom_call.1} parent=1 // pred_check_branch
      %54 = sbr.rel (0) target = $region17
    $region16: #{tpu_custom_call.1} parent=1 // pred_region
      %56 = vsyncadd [#allocation6], 0
      %s57 = sshll.u32 %s3, 4
      %s58 = int_to_ptr.hbm [resolvable:$true] %s57
      %s59 = sshll.u32 [#allocation7], 4
      %s60 = int_to_ptr.vmem [resolvable:$true] %s59
      %65 = dma.hbm_to_vmem [thread:$0]  %s58, 1024, %s60, [#allocation6], 64, 64, 4
    $region17: #{tpu_custom_call.1} parent=1 // pred_fallthru
      _
    // Predicated region
    $region18: #{tpu_custom_call.1} parent=1 // pred_check
      _
    $region19: #{tpu_custom_call.1} parent=1 // pred_check_branch
      %67 = sbr.rel (0) target = $region21
    $region20: #{tpu_custom_call.1} parent=1 // pred_region
      _
    $region21: #{tpu_custom_call.1} parent=1 // pred_fallthru
      _
    // Predicated region
    $region22: #{tpu_custom_call.1} parent=1 // pred_check
      _
    $region23: #{tpu_custom_call.1} parent=1 // pred_check_branch
      %69 = sbr.rel (0) target = $region25
    $region24: #{tpu_custom_call.1} parent=1 // pred_region
      %71 = vsyncadd [#allocation9], 0
      %s72 = sshll.u32 %s5, 4
      %s73 = int_to_ptr.hbm [resolvable:$true] %s72
      %s74 = sshll.u32 [#allocation8], 4
      %s75 = int_to_ptr.vmem [resolvable:$true] %s74
      %80 = dma.hbm_to_vmem [thread:$0]  %s73, 1024, %s75, [#allocation9], 64, 64, 4
    $region25: #{tpu_custom_call.1} parent=1 // pred_fallthru
      _
    // Predicated region
    $region26: #{tpu_custom_call.1} parent=1 // pred_check
      _
    $region27: #{tpu_custom_call.1} parent=1 // pred_check_branch
      %82 = sbr.rel (0) target = $region29
    $region28: #{tpu_custom_call.1} parent=1 // pred_region
      _
    $region29: #{tpu_custom_call.1} parent=1 // pred_fallthru
      _
    // Predicated region
    $region30: #{tpu_custom_call.1} parent=1 // pred_check
      _
    $region31: #{tpu_custom_call.1} parent=1 // pred_check_branch
      %84 = sbr.rel (0) target = $region33
    $region32: #{tpu_custom_call.1} parent=1 // pred_region
      %86 = vsyncadd [#allocation9], 0
      %s87 = sshll.u32 %s7, 4
      %s88 = int_to_ptr.hbm [resolvable:$true] %s87
      %s89 = sshll.u32 [#allocation10], 4
      %s90 = int_to_ptr.vmem [resolvable:$true] %s89
      %95 = dma.hbm_to_vmem [thread:$0]  %s88, 1024, %s90, [#allocation9], 64, 64, 4
    $region33: #{tpu_custom_call.1} parent=1 // pred_fallthru
      _
    // Predicated region
    $region34: #{tpu_custom_call.1} parent=1 // pred_check
      _
    $region35: #{tpu_custom_call.1} parent=1 // pred_check_branch
      %97 = sbr.rel (0) target = $region37
    $region36: #{tpu_custom_call.1} parent=1 // pred_region
      _
    $region37: #{tpu_custom_call.1} parent=1 // pred_fallthru
      _
    // Predicated region
    $region38: #{tpu_custom_call.1} parent=1 // pred_check
      _
    $region39: #{tpu_custom_call.1} parent=1 // pred_check_branch
      %99 = sbr.rel (0) target = $region41
    $region40: #{tpu_custom_call.1} parent=1 // pred_region
      %101 = vsyncadd [#allocation12], 0
      %s102 = sshll.u32 %s9, 4
      %s103 = int_to_ptr.hbm [resolvable:$true] %s102
      %s104 = sshll.u32 [#allocation11], 4
      %s105 = int_to_ptr.vmem [resolvable:$true] %s104
      %110 = dma.hbm_to_vmem [thread:$0]  %s103, 1024, %s105, [#allocation12], 64, 64, 4
    $region41: #{tpu_custom_call.1} parent=1 // pred_fallthru
      _
    // Predicated region
    $region42: #{tpu_custom_call.1} parent=1 // pred_check
      _
    $region43: #{tpu_custom_call.1} parent=1 // pred_check_branch
      %112 = sbr.rel (0) target = $region45
    $region44: #{tpu_custom_call.1} parent=1 // pred_region
      _
    $region45: #{tpu_custom_call.1} parent=1 // pred_fallthru
      _
    // Predicated region
    $region46: #{tpu_custom_call.1} parent=1 // pred_check
      _
    $region47: #{tpu_custom_call.1} parent=1 // pred_check_branch
      %114 = sbr.rel (0) target = $region49
    $region48: #{tpu_custom_call.1} parent=1 // pred_region
      %116 = vsyncadd [#allocation12], 0
      %s117 = sshll.u32 %s11, 4
      %s118 = int_to_ptr.hbm [resolvable:$true] %s117
      %s119 = sshll.u32 [#allocation13], 4
      %s120 = int_to_ptr.vmem [resolvable:$true] %s119
      %125 = dma.hbm_to_vmem [thread:$0]  %s118, 1024, %s120, [#allocation12], 64, 64, 4
    $region49: #{tpu_custom_call.1} parent=1 // pred_fallthru
      _
    // Predicated region
    $region50: #{tpu_custom_call.1} parent=1 // pred_check
      _
    $region51: #{tpu_custom_call.1} parent=1 // pred_check_branch
      %127 = sbr.rel (0) target = $region53
    $region52: #{tpu_custom_call.1} parent=1 // pred_region
      _
    $region53: #{tpu_custom_call.1} parent=1 // pred_fallthru
      _
    // Predicated region
    $region54: #{tpu_custom_call.1} parent=1 // pred_check
      _
    $region55: #{tpu_custom_call.1} parent=1 // pred_check_branch
      %129 = sbr.rel (0) target = $region57
    $region56: #{tpu_custom_call.1} parent=1 // pred_region
      %131 = dma.done [#allocation3], 256
    $region57: #{tpu_custom_call.1} parent=1 // pred_fallthru
      _
    // Predicated region
    $region58: #{tpu_custom_call.1} parent=1 // pred_check
      _
    $region59: #{tpu_custom_call.1} parent=1 // pred_check_branch
      %133 = sbr.rel (0) target = $region61
    $region60: #{tpu_custom_call.1} parent=1 // pred_region
      %135 = dma.done [#allocation6], 128
    $region61: #{tpu_custom_call.1} parent=1 // pred_fallthru
      _
    // Predicated region
    $region62: #{tpu_custom_call.1} parent=1 // pred_check
      _
    $region63: #{tpu_custom_call.1} parent=1 // pred_check_branch
      %137 = sbr.rel (0) target = $region65
    $region64: #{tpu_custom_call.1} parent=1 // pred_region
      %139 = dma.done [#allocation6], 1024
    $region65: #{tpu_custom_call.1} parent=1 // pred_fallthru
      _
    // Predicated region
    $region66: #{tpu_custom_call.1} parent=1 // pred_check
      _
    $region67: #{tpu_custom_call.1} parent=1 // pred_check_branch
      %141 = sbr.rel (0) target = $region69
    $region68: #{tpu_custom_call.1} parent=1 // pred_region
      %143 = dma.done [#allocation9], 1024
    $region69: #{tpu_custom_call.1} parent=1 // pred_fallthru
      _
    // Predicated region
    $region70: #{tpu_custom_call.1} parent=1 // pred_check
      _
    $region71: #{tpu_custom_call.1} parent=1 // pred_check_branch
      %145 = sbr.rel (0) target = $region73
    $region72: #{tpu_custom_call.1} parent=1 // pred_region
      %147 = dma.done [#allocation9], 1024
    $region73: #{tpu_custom_call.1} parent=1 // pred_fallthru
      _
    // Predicated region
    $region74: #{tpu_custom_call.1} parent=1 // pred_check
      _
    $region75: #{tpu_custom_call.1} parent=1 // pred_check_branch
      %149 = sbr.rel (0) target = $region77
    $region76: #{tpu_custom_call.1} parent=1 // pred_region
      %151 = dma.done [#allocation12], 1024
    $region77: #{tpu_custom_call.1} parent=1 // pred_fallthru
      _
    // Predicated region
    $region78: #{tpu_custom_call.1} parent=1 // pred_check
      _
    $region79: #{tpu_custom_call.1} parent=1 // pred_check_branch
      %153 = sbr.rel (0) target = $region81
    $region80: #{tpu_custom_call.1} parent=1 // pred_region
      %155 = dma.done [#allocation12], 1024
    $region81: #{tpu_custom_call.1} parent=1 // pred_fallthru
      _
    %v157 = vld [vmem:[#allocation2] sm:$0xff]
    %v158 = vld [vmem:[#allocation2 + $0x8] sm:$0xff]
    %v159 = vpack.c.bf16 %v158, %v157
    %v160 = vld [vmem:[#allocation5] sm:$0xf]
    %v161 = vld [vmem:[#allocation5 + $0x4] sm:$0xf]
    %v162 = vld [vmem:[%s2] sm:$0x1]
    %v164 = vperm.slane %v162, 0
    %v168 = vunpack.c.l.b16 %v160
    %v169 = vunpack.c.l.b16 %v161
    %v170 = vpack.c.b16 %v169, %v168
    %vm172 = vcmask 130048
    %v174 = vsel %vm172, %v159, 0
    %176 = vmatpush.bf16.msra.mxu0 0
    %177 = vmatpush.bf16.msra.mxu0 0
    %178 = vmatpush.bf16.msra.mxu0 0
    %179 = vmatpush.bf16.msra.mxu0 0
    %180 = vmatpush.bf16.msra.mxu0 0
    %181 = vmatpush.bf16.msra.mxu0 0
    %182 = vmatpush.bf16.msra.mxu0 0
    %183 = vmatpush.bf16.msra.mxu0 %v170
    %184 = vmatmul.bf16.gmra.mxu0 %v174
    %v185 = vpop.f32.mrf.mxu0
    %v186 = vadd.f32 %v164, %v185
    %v187 = vpop.f32.mrf.mxu0
    %v188 = vadd.f32 %v164, %v187
    %189 = vdwg.mxu0
    %v190 = vmax.f32 %v186, 0.0
    %v191 = vmax.f32 %v188, 0.0
    %v192 = vpack.c.bf16 %v191, %v190
    %v193 = vld [vmem:[#allocation7] sm:$0xf]
    %v194 = vld [vmem:[#allocation7 + $0x4] sm:$0xf]
    %v195 = vld [vmem:[#allocation7 + $0x8] sm:$0xf]
    %v196 = vld [vmem:[#allocation7 + $0xc] sm:$0xf]
    %v197 = vld [vmem:[#allocation7 + $0x10] sm:$0xf]
    %v198 = vld [vmem:[#allocation7 + $0x14] sm:$0xf]
    %v199 = vld [vmem:[#allocation7 + $0x18] sm:$0xf]
    %v200 = vld [vmem:[#allocation7 + $0x1c] sm:$0xf]
    %v201 = vld [vmem:[#allocation7 + $0x20] sm:$0xf]
    %v202 = vld [vmem:[#allocation7 + $0x24] sm:$0xf]
    %v203 = vld [vmem:[#allocation7 + $0x28] sm:$0xf]
    %v204 = vld [vmem:[#allocation7 + $0x2c] sm:$0xf]
    %v205 = vld [vmem:[#allocation7 + $0x30] sm:$0xf]
    %v206 = vld [vmem:[#allocation7 + $0x34] sm:$0xf]
    %v207 = vld [vmem:[#allocation7 + $0x38] sm:$0xf]
    %v208 = vld [vmem:[#allocation7 + $0x3c] sm:$0xf]
    %v209 = vld [vmem:[%s4] sm:$0x1]
    %v211 = vperm.slane %v209, 0
    %v229 = vunpack.c.l.b16 %v193
    %v230 = vunpack.c.l.b16 %v194
    %v231 = vunpack.c.l.b16 %v195
    %v232 = vunpack.c.l.b16 %v196
    %v233 = vunpack.c.l.b16 %v197
    %v234 = vunpack.c.l.b16 %v198
    %v235 = vunpack.c.l.b16 %v199
    %v236 = vunpack.c.l.b16 %v200
    %v237 = vunpack.c.l.b16 %v201
    %v238 = vunpack.c.l.b16 %v202
    %v239 = vunpack.c.l.b16 %v203
    %v240 = vunpack.c.l.b16 %v204
    %v241 = vunpack.c.l.b16 %v205
    %v242 = vunpack.c.l.b16 %v206
    %v243 = vunpack.c.l.b16 %v207
    %v244 = vunpack.c.l.b16 %v208
    %v245 = vpack.c.b16 %v230, %v229
    %v246 = vpack.c.b16 %v232, %v231
    %v247 = vpack.c.b16 %v234, %v233
    %v248 = vpack.c.b16 %v236, %v235
    %v249 = vpack.c.b16 %v238, %v237
    %v250 = vpack.c.b16 %v240, %v239
    %v251 = vpack.c.b16 %v242, %v241
    %v252 = vpack.c.b16 %v244, %v243
    %261 = vmatpush.bf16.msra.mxu0 %v252
    %262 = vmatpush.bf16.msra.mxu0 %v251
    %263 = vmatpush.bf16.msra.mxu0 %v250
    %264 = vmatpush.bf16.msra.mxu0 %v249
    %265 = vmatpush.bf16.msra.mxu0 %v248
    %266 = vmatpush.bf16.msra.mxu0 %v247
    %267 = vmatpush.bf16.msra.mxu0 %v246
    %268 = vmatpush.bf16.msra.mxu0 %v245
    %269 = vmatmul.bf16.gmra.mxu0 %v192
    %v270 = vpop.f32.mrf.mxu0
    %v271 = vadd.f32 %v211, %v270
    %v272 = vpop.f32.mrf.mxu0
    %v273 = vadd.f32 %v211, %v272
    %274 = vdwg.mxu0
    %v275 = vmax.f32 %v271, 0.0
    %v276 = vmax.f32 %v273, 0.0
    %v277 = vpack.c.bf16 %v276, %v275
    %v278 = vld [vmem:[#allocation8] sm:$0xf]
    %v279 = vld [vmem:[#allocation8 + $0x4] sm:$0xf]
    %v280 = vld [vmem:[#allocation8 + $0x8] sm:$0xf]
    %v281 = vld [vmem:[#allocation8 + $0xc] sm:$0xf]
    %v282 = vld [vmem:[#allocation8 + $0x10] sm:$0xf]
    %v283 = vld [vmem:[#allocation8 + $0x14] sm:$0xf]
    %v284 = vld [vmem:[#allocation8 + $0x18] sm:$0xf]
    %v285 = vld [vmem:[#allocation8 + $0x1c] sm:$0xf]
    %v286 = vld [vmem:[#allocation8 + $0x20] sm:$0xf]
    %v287 = vld [vmem:[#allocation8 + $0x24] sm:$0xf]
    %v288 = vld [vmem:[#allocation8 + $0x28] sm:$0xf]
    %v289 = vld [vmem:[#allocation8 + $0x2c] sm:$0xf]
    %v290 = vld [vmem:[#allocation8 + $0x30] sm:$0xf]
    %v291 = vld [vmem:[#allocation8 + $0x34] sm:$0xf]
    %v292 = vld [vmem:[#allocation8 + $0x38] sm:$0xf]
    %v293 = vld [vmem:[#allocation8 + $0x3c] sm:$0xf]
    %v294 = vld [vmem:[%s6] sm:$0x1]
    %v296 = vperm.slane %v294, 0
    %v314 = vunpack.c.l.b16 %v278
    %v315 = vunpack.c.l.b16 %v279
    %v316 = vunpack.c.l.b16 %v280
    %v317 = vunpack.c.l.b16 %v281
    %v318 = vunpack.c.l.b16 %v282
    %v319 = vunpack.c.l.b16 %v283
    %v320 = vunpack.c.l.b16 %v284
    %v321 = vunpack.c.l.b16 %v285
    %v322 = vunpack.c.l.b16 %v286
    %v323 = vunpack.c.l.b16 %v287
    %v324 = vunpack.c.l.b16 %v288
    %v325 = vunpack.c.l.b16 %v289
    %v326 = vunpack.c.l.b16 %v290
    %v327 = vunpack.c.l.b16 %v291
    %v328 = vunpack.c.l.b16 %v292
    %v329 = vunpack.c.l.b16 %v293
    %v330 = vpack.c.b16 %v315, %v314
    %v331 = vpack.c.b16 %v317, %v316
    %v332 = vpack.c.b16 %v319, %v318
    %v333 = vpack.c.b16 %v321, %v320
    %v334 = vpack.c.b16 %v323, %v322
    %v335 = vpack.c.b16 %v325, %v324
    %v336 = vpack.c.b16 %v327, %v326
    %v337 = vpack.c.b16 %v329, %v328
    %346 = vmatpush.bf16.msra.mxu0 %v337
    %347 = vmatpush.bf16.msra.mxu0 %v336
    %348 = vmatpush.bf16.msra.mxu0 %v335
    %349 = vmatpush.bf16.msra.mxu0 %v334
    %350 = vmatpush.bf16.msra.mxu0 %v333
    %351 = vmatpush.bf16.msra.mxu0 %v332
    %352 = vmatpush.bf16.msra.mxu0 %v331
    %353 = vmatpush.bf16.msra.mxu0 %v330
    %354 = vmatmul.bf16.gmra.mxu0 %v277
    %v355 = vpop.f32.mrf.mxu0
    %v356 = vadd.f32 %v296, %v355
    %v357 = vpop.f32.mrf.mxu0
    %v358 = vadd.f32 %v296, %v357
    %359 = vdwg.mxu0
    %vm360 = vcmask 64512
    %361 = vst.msk [vmem:[%s13] sm:$0xff] %vm360, %v356
    %362 = vst.msk [vmem:[%s13 + $0x8] sm:$0xff] %vm360, %v358
    %v363 = vpack.c.bf16 %v358, %v356
    %v364 = vld [vmem:[#allocation10] sm:$0xf]
    %v365 = vld [vmem:[#allocation10 + $0x4] sm:$0xf]
    %v366 = vld [vmem:[#allocation10 + $0x8] sm:$0xf]
    %v367 = vld [vmem:[#allocation10 + $0xc] sm:$0xf]
    %v368 = vld [vmem:[#allocation10 + $0x10] sm:$0xf]
    %v369 = vld [vmem:[#allocation10 + $0x14] sm:$0xf]
    %v370 = vld [vmem:[#allocation10 + $0x18] sm:$0xf]
    %v371 = vld [vmem:[#allocation10 + $0x1c] sm:$0xf]
    %v372 = vld [vmem:[#allocation10 + $0x20] sm:$0xf]
    %v373 = vld [vmem:[#allocation10 + $0x24] sm:$0xf]
    %v374 = vld [vmem:[#allocation10 + $0x28] sm:$0xf]
    %v375 = vld [vmem:[#allocation10 + $0x2c] sm:$0xf]
    %v376 = vld [vmem:[#allocation10 + $0x30] sm:$0xf]
    %v377 = vld [vmem:[#allocation10 + $0x34] sm:$0xf]
    %v378 = vld [vmem:[#allocation10 + $0x38] sm:$0xf]
    %v379 = vld [vmem:[#allocation10 + $0x3c] sm:$0xf]
    %v380 = vld [vmem:[%s8] sm:$0x1]
    %v382 = vperm.slane %v380, 0
    %v400 = vunpack.c.l.b16 %v364
    %v401 = vunpack.c.l.b16 %v365
    %v402 = vunpack.c.l.b16 %v366
    %v403 = vunpack.c.l.b16 %v367
    %v404 = vunpack.c.l.b16 %v368
    %v405 = vunpack.c.l.b16 %v369
    %v406 = vunpack.c.l.b16 %v370
    %v407 = vunpack.c.l.b16 %v371
    %v408 = vunpack.c.l.b16 %v372
    %v409 = vunpack.c.l.b16 %v373
    %v410 = vunpack.c.l.b16 %v374
    %v411 = vunpack.c.l.b16 %v375
    %v412 = vunpack.c.l.b16 %v376
    %v413 = vunpack.c.l.b16 %v377
    %v414 = vunpack.c.l.b16 %v378
    %v415 = vunpack.c.l.b16 %v379
    %v416 = vpack.c.b16 %v401, %v400
    %v417 = vpack.c.b16 %v403, %v402
    %v418 = vpack.c.b16 %v405, %v404
    %v419 = vpack.c.b16 %v407, %v406
    %v420 = vpack.c.b16 %v409, %v408
    %v421 = vpack.c.b16 %v411, %v410
    %v422 = vpack.c.b16 %v413, %v412
    %v423 = vpack.c.b16 %v415, %v414
    %432 = vmatpush.bf16.msra.mxu0 %v423
    %433 = vmatpush.bf16.msra.mxu0 %v422
    %434 = vmatpush.bf16.msra.mxu0 %v421
    %435 = vmatpush.bf16.msra.mxu0 %v420
    %436 = vmatpush.bf16.msra.mxu0 %v419
    %437 = vmatpush.bf16.msra.mxu0 %v418
    %438 = vmatpush.bf16.msra.mxu0 %v417
    %439 = vmatpush.bf16.msra.mxu0 %v416
    %440 = vmatmul.bf16.gmra.mxu0 %v363
    %v441 = vpop.f32.mrf.mxu0
    %v442 = vadd.f32 %v382, %v441
    %v443 = vpop.f32.mrf.mxu0
    %v444 = vadd.f32 %v382, %v443
    %445 = vdwg.mxu0
    %v446 = vmax.f32 %v442, 0.0
    %v447 = vmax.f32 %v444, 0.0
    %v448 = vpack.c.bf16 %v447, %v446
    %v449 = vld [vmem:[#allocation11] sm:$0xf]
    %v450 = vld [vmem:[#allocation11 + $0x4] sm:$0xf]
    %v451 = vld [vmem:[#allocation11 + $0x8] sm:$0xf]
    %v452 = vld [vmem:[#allocation11 + $0xc] sm:$0xf]
    %v453 = vld [vmem:[#allocation11 + $0x10] sm:$0xf]
    %v454 = vld [vmem:[#allocation11 + $0x14] sm:$0xf]
    %v455 = vld [vmem:[#allocation11 + $0x18] sm:$0xf]
    %v456 = vld [vmem:[#allocation11 + $0x1c] sm:$0xf]
    %v457 = vld [vmem:[#allocation11 + $0x20] sm:$0xf]
    %v458 = vld [vmem:[#allocation11 + $0x24] sm:$0xf]
    %v459 = vld [vmem:[#allocation11 + $0x28] sm:$0xf]
    %v460 = vld [vmem:[#allocation11 + $0x2c] sm:$0xf]
    %v461 = vld [vmem:[#allocation11 + $0x30] sm:$0xf]
    %v462 = vld [vmem:[#allocation11 + $0x34] sm:$0xf]
    %v463 = vld [vmem:[#allocation11 + $0x38] sm:$0xf]
    %v464 = vld [vmem:[#allocation11 + $0x3c] sm:$0xf]
    %v465 = vld [vmem:[%s10] sm:$0x1]
    %v467 = vperm.slane %v465, 0
    %v485 = vunpack.c.l.b16 %v449
    %v486 = vunpack.c.l.b16 %v450
    %v487 = vunpack.c.l.b16 %v451
    %v488 = vunpack.c.l.b16 %v452
    %v489 = vunpack.c.l.b16 %v453
    %v490 = vunpack.c.l.b16 %v454
    %v491 = vunpack.c.l.b16 %v455
    %v492 = vunpack.c.l.b16 %v456
    %v493 = vunpack.c.l.b16 %v457
    %v494 = vunpack.c.l.b16 %v458
    %v495 = vunpack.c.l.b16 %v459
    %v496 = vunpack.c.l.b16 %v460
    %v497 = vunpack.c.l.b16 %v461
    %v498 = vunpack.c.l.b16 %v462
    %v499 = vunpack.c.l.b16 %v463
    %v500 = vunpack.c.l.b16 %v464
    %v501 = vpack.c.b16 %v486, %v485
    %v502 = vpack.c.b16 %v488, %v487
    %v503 = vpack.c.b16 %v490, %v489
    %v504 = vpack.c.b16 %v492, %v491
    %v505 = vpack.c.b16 %v494, %v493
    %v506 = vpack.c.b16 %v496, %v495
    %v507 = vpack.c.b16 %v498, %v497
    %v508 = vpack.c.b16 %v500, %v499
    %517 = vmatpush.bf16.msra.mxu0 %v508
    %518 = vmatpush.bf16.msra.mxu0 %v507
    %519 = vmatpush.bf16.msra.mxu0 %v506
    %520 = vmatpush.bf16.msra.mxu0 %v505
    %521 = vmatpush.bf16.msra.mxu0 %v504
    %522 = vmatpush.bf16.msra.mxu0 %v503
    %523 = vmatpush.bf16.msra.mxu0 %v502
    %524 = vmatpush.bf16.msra.mxu0 %v501
    %525 = vmatmul.bf16.gmra.mxu0 %v448
    %v526 = vpop.f32.mrf.mxu0
    %v527 = vadd.f32 %v467, %v526
    %v528 = vpop.f32.mrf.mxu0
    %v529 = vadd.f32 %v467, %v528
    %530 = vdwg.mxu0
    %v531 = vmax.f32 %v527, 0.0
    %v532 = vmax.f32 %v529, 0.0
    %v533 = vpack.c.bf16 %v532, %v531
    %v534 = vld [vmem:[#allocation13] sm:$0xf]
    %v535 = vld [vmem:[#allocation13 + $0x4] sm:$0xf]
    %v536 = vld [vmem:[#allocation13 + $0x8] sm:$0xf]
    %v537 = vld [vmem:[#allocation13 + $0xc] sm:$0xf]
    %v538 = vld [vmem:[#allocation13 + $0x10] sm:$0xf]
    %v539 = vld [vmem:[#allocation13 + $0x14] sm:$0xf]
    %v540 = vld [vmem:[#allocation13 + $0x18] sm:$0xf]
    %v541 = vld [vmem:[#allocation13 + $0x1c] sm:$0xf]
    %v542 = vld [vmem:[#allocation13 + $0x20] sm:$0xf]
    %v543 = vld [vmem:[#allocation13 + $0x24] sm:$0xf]
    %v544 = vld [vmem:[#allocation13 + $0x28] sm:$0xf]
    %v545 = vld [vmem:[#allocation13 + $0x2c] sm:$0xf]
    %v546 = vld [vmem:[#allocation13 + $0x30] sm:$0xf]
    %v547 = vld [vmem:[#allocation13 + $0x34] sm:$0xf]
    %v548 = vld [vmem:[#allocation13 + $0x38] sm:$0xf]
    %v549 = vld [vmem:[#allocation13 + $0x3c] sm:$0xf]
    %v550 = vld [vmem:[%s12] sm:$0x1]
    %v552 = vperm.slane %v550, 0
    %v570 = vunpack.c.l.b16 %v534
    %v571 = vunpack.c.l.b16 %v535
    %v572 = vunpack.c.l.b16 %v536
    %v573 = vunpack.c.l.b16 %v537
    %v574 = vunpack.c.l.b16 %v538
    %v575 = vunpack.c.l.b16 %v539
    %v576 = vunpack.c.l.b16 %v540
    %v577 = vunpack.c.l.b16 %v541
    %v578 = vunpack.c.l.b16 %v542
    %v579 = vunpack.c.l.b16 %v543
    %v580 = vunpack.c.l.b16 %v544
    %v581 = vunpack.c.l.b16 %v545
    %v582 = vunpack.c.l.b16 %v546
    %v583 = vunpack.c.l.b16 %v547
    %v584 = vunpack.c.l.b16 %v548
    %v585 = vunpack.c.l.b16 %v549
    %v586 = vpack.c.b16 %v571, %v570
    %v587 = vpack.c.b16 %v573, %v572
    %v588 = vpack.c.b16 %v575, %v574
    %v589 = vpack.c.b16 %v577, %v576
    %v590 = vpack.c.b16 %v579, %v578
    %v591 = vpack.c.b16 %v581, %v580
    %v592 = vpack.c.b16 %v583, %v582
    %v593 = vpack.c.b16 %v585, %v584
    %602 = vmatpush.bf16.msra.mxu0 %v593
    %603 = vmatpush.bf16.msra.mxu0 %v592
    %604 = vmatpush.bf16.msra.mxu0 %v591
    %605 = vmatpush.bf16.msra.mxu0 %v590
    %606 = vmatpush.bf16.msra.mxu0 %v589
    %607 = vmatpush.bf16.msra.mxu0 %v588
    %608 = vmatpush.bf16.msra.mxu0 %v587
    %609 = vmatpush.bf16.msra.mxu0 %v586
    %610 = vmatmul.bf16.gmra.mxu0 %v533
    %v611 = vpop.f32.mrf.mxu0
    %v612 = vadd.f32 %v552, %v611
    %v613 = vpop.f32.mrf.mxu0
    %v614 = vadd.f32 %v552, %v613
    %615 = vdwg.mxu0
    %v616 = vmul.f32 %v612, 0.5
    %v617 = vmul.f32 %v614, 0.5
    %v618 = vtanh.pop %v616
    %v619 = vtanh.pop %v617
    %v620 = vmul.f32 %v618, 0.5
    %v621 = vmul.f32 %v619, 0.5
    %v622 = vadd.f32 %v620, 0.5
    %v623 = vadd.f32 %v621, 0.5
    %624 = vst.msk [vmem:[#allocation14] sm:$0xff] %vm172, %v622
    %625 = vst.msk [vmem:[#allocation14 + $0x8] sm:$0xff] %vm172, %v623
    // Predicated region
    $region82: #{tpu_custom_call.1} parent=1 // pred_check
      _
    $region83: #{tpu_custom_call.1} parent=1 // pred_check_branch
      %627 = sbr.rel (0) target = $region85
    $region84: #{tpu_custom_call.1} parent=1 // pred_region
      _
    $region85: #{tpu_custom_call.1} parent=1 // pred_fallthru
      _
    // Predicated region
    $region86: #{tpu_custom_call.1} parent=1 // pred_check
      _
    $region87: #{tpu_custom_call.1} parent=1 // pred_check_branch
      %629 = sbr.rel (0) target = $region89
    $region88: #{tpu_custom_call.1} parent=1 // pred_region
      %631 = vsyncadd [#allocation4], 0
      %s632 = sshll.u32 [#allocation14], 4
      %s633 = int_to_ptr.vmem [resolvable:$true] %s632
      %s634 = sshll.u32 %s14, 4
      %s635 = int_to_ptr.hbm [resolvable:$true] %s634
      %640 = dma.vmem_to_hbm [thread:$0]  %s633, 256, %s635, [#allocation4], 128, 128, 8
    $region89: #{tpu_custom_call.1} parent=1 // pred_fallthru
      _
    // Predicated region
    $region90: #{tpu_custom_call.1} parent=1 // pred_check
      _
    $region91: #{tpu_custom_call.1} parent=1 // pred_check_branch
      %642 = sbr.rel (0) target = $region93
    $region92: #{tpu_custom_call.1} parent=1 // pred_region
      _
    $region93: #{tpu_custom_call.1} parent=1 // pred_fallthru
      _
    // Predicated region
    $region94: #{tpu_custom_call.1} parent=1 // pred_check
      _
    $region95: #{tpu_custom_call.1} parent=1 // pred_check_branch
      %644 = sbr.rel (0) target = $region97
    $region96: #{tpu_custom_call.1} parent=1 // pred_region
      %646 = dma.done [#allocation4], 256
    $region97: #{tpu_custom_call.1} parent=1 // pred_fallthru
      _
    %647 = vsyncpa [#allocation3], 1
    %648 = vsyncpa [#allocation6], 1
    %649 = vsyncpa [#allocation9], 1
    %650 = vsyncpa [#allocation12], 1
    %651 = vsyncpa [#allocation4], 1

</llo_original>
